<compile_context>
chip_gen: v5e
topology: v5e:2x2
jax: 0.10.0
libtpu: 0.0.40
codegen_flags: <defaults>
</compile_context>

<pallas_src>
import functools
import inspect
from typing import NamedTuple

import jax
import jax.numpy as jnp
from jax.experimental import pallas as pl
from jax.experimental.pallas import tpu as pltpu

_MIB = 1024 * 1024


def _round_up(x: int, m: int) -> int:
    return (x + m - 1) // m * m


def _tpu_generation() -> str:
    try:
        kind = jax.devices()[0].device_kind.lower()
    except Exception:
        return "unknown"
    if "v5 lite" in kind or "v5e" in kind or "v5lite" in kind:
        return "v5e"
    if "v6" in kind:
        return "v6e"
    if "v7" in kind or "tpu7" in kind or kind.endswith("7x"):
        return "v7x"
    return "unknown"


def _vmem_capacity_bytes() -> int:
    try:
        cap = int(pltpu.get_tpu_info().vmem_capacity_bytes)
        if cap > 0:
            return cap
    except Exception:
        pass
    return 64 * _MIB if _tpu_generation() == "v7x" else 128 * _MIB


def _generation_defaults():
    """Per-generation (tm_max, tn_hidden, vmem_limit_bytes)."""
    gen = _tpu_generation()
    cap = _vmem_capacity_bytes()
    if gen == "v6e":
        # Needs ~650-700 FLOP per weight byte to be MXU-bound -> large token tile.
        tm_max, tn, vmem = 1024, 512, 104 * _MIB
    elif gen == "v5e":
        # ~240 FLOP/byte suffices; spend VMEM on bigger weight tiles instead.
        tm_max, tn, vmem = 512, 512, 104 * _MIB
    elif gen == "v7x":
        # 64 MiB physical VMEM; ~310 FLOP/byte -> tm=512 already MXU-bound.
        tm_max, tn, vmem = 512, 256, 56 * _MIB
    else:
        tm_max, tn, vmem = 256, 256, 48 * _MIB
    vmem = min(vmem, int(cap * 0.85))
    return tm_max, tn, vmem


def _supports_pipeline_mode() -> bool:
    try:
        return (hasattr(pl, "Buffered")
                and "pipeline_mode" in inspect.signature(pl.BlockSpec).parameters)
    except Exception:
        return False


class PreparedFFNWeights(NamedTuple):
    w13_t: jax.Array  # (dim, 2*hidden_pad): per hidden tile k, cols
    #                   [k*2tn, k*2tn+tn) = W1^T tile k, next tn cols = W3^T tile k
    w2_t: jax.Array   # (hidden_pad, dim) = zero-padded W2^T
    tn: int           # hidden tile size baked into the w13_t interleave


def prepare_ffn_weights(w1, w2, w3, *, tn_hidden=None, dtype=jnp.bfloat16):
    """One-time (outside jit) weight preparation.

    w1, w3: (hidden, dim) ; w2: (dim, hidden)  [PyTorch nn.Linear layout]

    - Transposes to matmul-friendly layouts.
    - Zero-pads hidden to a multiple of the tile size tn (numerically exact).
    - Fuses W1^T|W3^T into one (dim, 2*hidden_pad) weight, interleaved per tile.
    - Casts to bf16 by default: do NOT feed f32 weights at real sizes
      (dim=4096, hidden=11008) -- it doubles weight HBM traffic and exceeds the
      v7x VMEM budget.  Accumulation stays f32 inside the kernel.
    """
    w1 = jnp.asarray(w1)
    w2 = jnp.asarray(w2)
    w3 = jnp.asarray(w3)
    hidden, dim = w1.shape

    _, tn_default, _ = _generation_defaults()
    tn = tn_default if tn_hidden is None else tn_hidden
    tn = max(128, _round_up(tn, 128))
    tn = min(tn, _round_up(hidden, 128))
    hidden_pad = _round_up(hidden, tn)
    pad = hidden_pad - hidden
    if pad:
        w1 = jnp.pad(w1, ((0, pad), (0, 0)))
        w3 = jnp.pad(w3, ((0, pad), (0, 0)))
        w2 = jnp.pad(w2, ((0, 0), (0, pad)))

    n_k = hidden_pad // tn
    # (n_k, 2, tn, dim): per hidden tile, W1 rows then W3 rows.
    w13 = jnp.stack([w1.reshape(n_k, tn, dim), w3.reshape(n_k, tn, dim)], axis=1)
    w13_t = w13.reshape(2 * hidden_pad, dim).T  # (dim, 2*hidden_pad)
    w2_t = w2.T                                 # (hidden_pad, dim)
    if dtype is not None:
        w13_t = w13_t.astype(dtype)
        w2_t = w2_t.astype(dtype)
    w13_t, w2_t = jax.block_until_ready((w13_t, w2_t))
    return PreparedFFNWeights(w13_t=w13_t, w2_t=w2_t, tn=int(tn))


def _ffn_kernel(x_ref, w13_ref, w2_ref, o_ref, *scratch, tn):
    """One (token tile i, hidden tile k) step of the SwiGLU MLP.

    x_ref  : (tm, dim)     activations (constant along k)
    w13_ref: (dim, 2*tn)   fused [W1^T | W3^T] tile k
    w2_ref : (tn, dim)     W2^T tile k
    o_ref  : (tm, dim)     output tile, resident across k
    scratch: optional (tm, dim) f32 accumulator (only when output is not f32)
    """
    acc_ref = scratch[0] if scratch else o_ref
    k = pl.program_id(1)

    @pl.when(k == 0)
    def _init():
        acc_ref[...] = jnp.zeros_like(acc_ref)

    # Single fused gate+value projection for this hidden tile (MXU, f32 acc).
    h13 = jnp.dot(x_ref[...], w13_ref[...], preferred_element_type=jnp.float32)
    h1 = h13[:, :tn]
    h3 = h13[:, tn:]
    # Fused SiLU(h1) * h3: sigmoid on EUP, muls on VPU, hidden under MXU work.
    h = h1 * jax.nn.sigmoid(h1) * h3
    # Partial down-projection, accumulated across hidden tiles.
    acc_ref[...] += jnp.dot(h.astype(w2_ref.dtype), w2_ref[...],
                            preferred_element_type=jnp.float32)

    if scratch:
        @pl.when(k == pl.num_programs(1) - 1)
        def _finalize():
            o_ref[...] = acc_ref[...].astype(o_ref.dtype)


@functools.partial(
    jax.jit,
    static_argnames=("tn", "tm", "vmem_limit_bytes", "deep_weight_buffering"))
def _ffn_2d(x2d, w13_t, w2_t, *, tn, tm, vmem_limit_bytes, deep_weight_buffering):
    M, dim = x2d.shape
    hidden_pad = w2_t.shape[0]
    assert w13_t.shape == (dim, 2 * hidden_pad)
    assert hidden_pad % tn == 0 and M % tm == 0

    grid = (M // tm, hidden_pad // tn)
    out_dtype = x2d.dtype
    f32_out = out_dtype == jnp.float32
    # f32 output: accumulate directly into the resident output block (no scratch).
    scratch_shapes = [] if f32_out else [pltpu.VMEM((tm, dim), jnp.float32)]

    x_spec = pl.BlockSpec((tm, dim), lambda i, k: (i, 0))
    out_spec = pl.BlockSpec((tm, dim), lambda i, k: (i, 0))
    if deep_weight_buffering and _supports_pipeline_mode():
        # Decode / single-token-tile regime is purely weight-bandwidth-bound:
        # deepen weight prefetch so the DMA queue never drains.
        w13_spec = pl.BlockSpec((dim, 2 * tn), lambda i, k: (0, k),
                                pipeline_mode=pl.Buffered(3))
        w2_spec = pl.BlockSpec((tn, dim), lambda i, k: (k, 0),
                               pipeline_mode=pl.Buffered(3))
    else:
        w13_spec = pl.BlockSpec((dim, 2 * tn), lambda i, k: (0, k))
        w2_spec = pl.BlockSpec((tn, dim), lambda i, k: (k, 0))

    wbytes = (w13_t.size * w13_t.dtype.itemsize
              + w2_t.size * w2_t.dtype.itemsize)
    cost = pl.CostEstimate(
        flops=6 * M * dim * hidden_pad,
        transcendentals=M * hidden_pad,
        bytes_accessed=(x2d.size * x2d.dtype.itemsize   # activations in
                        + wbytes * grid[0]               # weights per token tile
                        + M * dim * x2d.dtype.itemsize), # output
    )

    return pl.pallas_call(
        functools.partial(_ffn_kernel, tn=tn),
        out_shape=jax.ShapeDtypeStruct((M, dim), out_dtype),
        grid_spec=pltpu.PrefetchScalarGridSpec(
            num_scalar_prefetch=0,
            grid=grid,
            in_specs=[x_spec, w13_spec, w2_spec],
            out_specs=out_spec,
            scratch_shapes=scratch_shapes,
        ),
        compiler_params=pltpu.CompilerParams(
            dimension_semantics=("parallel", "arbitrary"),
            vmem_limit_bytes=vmem_limit_bytes,
        ),
        cost_estimate=cost,
    )(x2d, w13_t, w2_t)


def _bucket_tm(m: int, tm_max: int, itemsize: int) -> int:
    """Power-of-two token-tile bucket (limits recompiles for variable M)."""
    min_tile = 8 if itemsize >= 4 else 16   # bf16 activations pack 16 sublanes
    t = min_tile
    while t < m and t < tm_max:
        t *= 2
    return max(min(t, tm_max), min_tile)


def feed_forward(x, weights: PreparedFFNWeights, *, tm=None):
    """x: (..., dim); weights from prepare_ffn_weights()."""
    orig_shape = x.shape
    dim = orig_shape[-1]
    x2d = x.reshape(-1, dim)
    M = x2d.shape[0]

    tm_max, _, vmem_limit = _generation_defaults()
    if tm is not None:
        tm_max = tm
    tm_eff = _bucket_tm(M, tm_max, jnp.dtype(x.dtype).itemsize)

    m_pad = _round_up(M, tm_eff)
    if m_pad != M:
        # Zero rows produce zero output (no bias); sliced off at the end.
        x2d = jnp.pad(x2d, ((0, m_pad - M), (0, 0)))

    n_token_tiles = m_pad // tm_eff
    n_k = weights.w2_t.shape[0] // weights.tn
    deep = (n_token_tiles == 1) and (n_k >= 4)

    out = _ffn_2d(x2d, weights.w13_t, weights.w2_t,
                  tn=weights.tn, tm=tm_eff,
                  vmem_limit_bytes=vmem_limit,
                  deep_weight_buffering=deep)
    return out[:M].reshape(orig_shape)


if __name__ == "__main__":
    # Small, TPU-tile-friendly shapes consistent with the module:
    # dim=128, hidden_dim=256, batch=2, seq=8.
    dim, hidden_dim = 128, 256
    batch, seq = 2, 8

    key = jax.random.PRNGKey(0)
    kx, k1, k2, k3 = jax.random.split(key, 4)

    x = jax.random.normal(kx, (batch, seq, dim), dtype=jnp.float32)
    # nn.Linear(dim, hidden) -> weight shape (hidden, dim); deterministic init.
    w1 = jax.random.normal(k1, (hidden_dim, dim), dtype=jnp.float32) * 0.02
    w2 = jax.random.normal(k2, (dim, hidden_dim), dtype=jnp.float32) * 0.02
    w3 = jax.random.normal(k3, (hidden_dim, dim), dtype=jnp.float32) * 0.02

    def ref_ffn(xr, w1r, w2r, w3r):
        h1 = xr @ w1r.T
        return ((h1 * jax.nn.sigmoid(h1)) * (xr @ w3r.T)) @ w2r.T

    # ---- default (bf16-weight) path --------------------------------------
    weights_bf16 = prepare_ffn_weights(w1, w2, w3)          # bf16 by default
    out = jax.block_until_ready(feed_forward(x, weights_bf16))
    # Reference built from the SAME bf16-rounded weights.
    w1b = w1.astype(jnp.bfloat16).astype(jnp.float32)
    w2b = w2.astype(jnp.bfloat16).astype(jnp.float32)
    w3b = w3.astype(jnp.bfloat16).astype(jnp.float32)
    ref = ref_ffn(x, w1b, w2b, w3b)
    assert out.shape == x.shape
    assert jnp.allclose(out, ref, atol=2e-2, rtol=2e-2), "bf16-weight mismatch"

    # ---- f32-weight path + ragged token count (M = 14) -------------------
    weights_f32 = prepare_ffn_weights(w1, w2, w3, dtype=None)
    x2 = jax.random.normal(kx, (2, 7, dim), dtype=jnp.float32)
    out2 = jax.block_until_ready(feed_forward(x2, weights_f32))
    ref2 = ref_ffn(x2, w1, w2, w3)
    assert jnp.allclose(out2, ref2, atol=2e-3, rtol=2e-3), "ragged/f32 mismatch"

    # ---- hidden padding (hidden=320 -> padded) + bf16 activations --------
    hidden2 = 320
    k4, k5, k6 = jax.random.split(k1, 3)
    w1c = jax.random.normal(k4, (hidden2, dim), dtype=jnp.float32) * 0.02
    w2c = jax.random.normal(k5, (dim, hidden2), dtype=jnp.float32) * 0.02
    w3c = jax.random.normal(k6, (hidden2, dim), dtype=jnp.float32) * 0.02
    weights_pad = prepare_ffn_weights(w1c, w2c, w3c)         # bf16, padded hidden
    xb = x.astype(jnp.bfloat16)
    out3 = jax.block_until_ready(feed_forward(xb, weights_pad))
    ref3 = ref_ffn(xb.astype(jnp.float32),
                   w1c.astype(jnp.bfloat16).astype(jnp.float32),
                   w2c.astype(jnp.bfloat16).astype(jnp.float32),
                   w3c.astype(jnp.bfloat16).astype(jnp.float32))
    assert jnp.allclose(out3.astype(jnp.float32), ref3, atol=2e-2, rtol=2e-2), \
        "padded-hidden/bf16 mismatch"

    print("KERNEL_OK")
</pallas_src>

<mosaic_0001>
module attributes {stable_mosaic.version = 11 : i64} {
  func.func @_ffn_kernel(%arg0: i32, %arg1: i32, %arg2: memref<16x128xf32, #tpu.memory_space<vmem>>, %arg3: memref<128x512xbf16, #tpu.memory_space<vmem>>, %arg4: memref<256x128xbf16, #tpu.memory_space<vmem>>, %arg5: memref<16x128xf32, #tpu.memory_space<vmem>>) attributes {dimension_semantics = [#tpu.dimension_semantics<parallel>, #tpu.dimension_semantics<arbitrary>], iteration_bounds = array<i64: 1, 1>, scalar_prefetch = 0 : i64, scratch_operands = 0 : i64, tpu.core_type = #tpu.core_type<tc>, window_params = [{transform_indices = @transform_0, window_bounds = array<i64: 16, 128>}, {transform_indices = @transform_1, window_bounds = array<i64: 128, 512>}, {transform_indices = @transform_2, window_bounds = array<i64: 256, 128>}, {transform_indices = @transform_3, window_bounds = array<i64: 16, 128>}]} {
    %c0_i32 = arith.constant 0 : i32
    %0 = arith.cmpi eq, %arg1, %c0_i32 : i32
    %1 = arith.extui %0 : i1 to i32
    %c0_i32_0 = arith.constant 0 : i32
    %2 = arith.cmpi ne, %1, %c0_i32_0 : i32
    scf.if %2 {
      %cst_12 = arith.constant 0.000000e+00 : f32
      %21 = vector.broadcast %cst_12 : f32 to vector<16x128xf32>
      %c0_13 = arith.constant 0 : index
      %c0_14 = arith.constant 0 : index
      %22 = vector.load %arg5[%c0_13, %c0_14] : memref<16x128xf32, #tpu.memory_space<vmem>>, vector<16x128xf32>
      tpu.vector_store %arg5[%c0_13, %c0_14], %21 {strides = array<i32>} : memref<16x128xf32, #tpu.memory_space<vmem>>, vector<16x128xf32>,
    } else {
    }
    %c0 = arith.constant 0 : index
    %c0_1 = arith.constant 0 : index
    %3 = vector.load %arg2[%c0, %c0_1] : memref<16x128xf32, #tpu.memory_space<vmem>>, vector<16x128xf32>
    %c0_2 = arith.constant 0 : index
    %c0_3 = arith.constant 0 : index
    %4 = vector.load %arg3[%c0_2, %c0_3] : memref<128x512xbf16, #tpu.memory_space<vmem>>, vector<128x512xbf16>
    %cst = arith.constant dense<0.000000e+00> : vector<16x512xf32>
    %5 = tpu.matmul %3, %4, %cst {dimension_numbers = #tpu.dot_dimension_numbers<[1], [0], [0], [1], [0, 0, 1, 1], [], []>} : vector<16x128xf32>, vector<128x512xbf16>, vector<16x512xf32> -> vector<16x512xf32>
    %6 = vector.extract_strided_slice %5 {offsets = [0, 0], sizes = [16, 256], strides = [1, 1]} : vector<16x512xf32> to vector<16x256xf32>
    %7 = vector.extract_strided_slice %5 {offsets = [0, 256], sizes = [16, 256], strides = [1, 1]} : vector<16x512xf32> to vector<16x256xf32>
    %8 = arith.negf %6 : vector<16x256xf32>
    %9 = math.exp %8 : vector<16x256xf32>
    %cst_4 = arith.constant 1.000000e+00 : f32
    %10 = vector.broadcast %cst_4 : f32 to vector<16x256xf32>
    %11 = arith.addf %10, %9 : vector<16x256xf32>
    %12 = arith.divf %10, %11 : vector<16x256xf32>
    %13 = arith.mulf %6, %12 : vector<16x256xf32>
    %14 = arith.mulf %13, %7 : vector<16x256xf32>
    %c0_5 = arith.constant 0 : index
    %c0_6 = arith.constant 0 : index
    %15 = vector.load %arg5[%c0_5, %c0_6] : memref<16x128xf32, #tpu.memory_space<vmem>>, vector<16x128xf32>
    %16 = arith.truncf %14 : vector<16x256xf32> to vector<16x256xbf16>
    %c0_7 = arith.constant 0 : index
    %c0_8 = arith.constant 0 : index
    %17 = vector.load %arg4[%c0_7, %c0_8] : memref<256x128xbf16, #tpu.memory_space<vmem>>, vector<256x128xbf16>
    %cst_9 = arith.constant dense<0.000000e+00> : vector<16x128xf32>
    %18 = tpu.matmul %16, %17, %cst_9 {dimension_numbers = #tpu.dot_dimension_numbers<[1], [0], [0], [1], [0, 0, 1, 1], [], []>} : vector<16x256xbf16>, vector<256x128xbf16>, vector<16x128xf32> -> vector<16x128xf32>
    %19 = arith.addf %15, %18 : vector<16x128xf32>
    %c0_10 = arith.constant 0 : index
    %c0_11 = arith.constant 0 : index
    %20 = vector.load %arg5[%c0_10, %c0_11] : memref<16x128xf32, #tpu.memory_space<vmem>>, vector<16x128xf32>
    tpu.vector_store %arg5[%c0_10, %c0_11], %19 {strides = array<i32>} : memref<16x128xf32, #tpu.memory_space<vmem>>, vector<16x128xf32>,
    return
  }
  func.func @transform_0(%arg0: i32, %arg1: i32) -> (i32, i32) {
    %c0_i32 = arith.constant 0 : i32
    %c0_i32_0 = arith.constant 0 : i32
    return %arg0, %c0_i32 : i32, i32
  }
  func.func @transform_1(%arg0: i32, %arg1: i32) -> (i32, i32) {
    %c0_i32 = arith.constant 0 : i32
    %c0_i32_0 = arith.constant 0 : i32
    return %c0_i32, %arg1 : i32, i32
  }
  func.func @transform_2(%arg0: i32, %arg1: i32) -> (i32, i32) {
    %c0_i32 = arith.constant 0 : i32
    %c0_i32_0 = arith.constant 0 : i32
    return %arg1, %c0_i32 : i32, i32
  }
  func.func @transform_3(%arg0: i32, %arg1: i32) -> (i32, i32) {
    %c0_i32 = arith.constant 0 : i32
    %c0_i32_0 = arith.constant 0 : i32
    return %arg0, %c0_i32 : i32, i32
  }
}

</mosaic_0001>

<llo_original>
// kernel: _ffn_2d.1
$region0: #{_ffn_2d.1}
  #allocation0 [shape = 'u32[]', space=smem, size = 0x4, offset = 0x4, fixed_abs, tag = 'smem constant byte address 0x4 - core index']
  #allocation1 [shape = 'u32[72,128]{1,0:T(1,128)}', space=vmem, size = 0x9000, scoped, tag = 'internal scratch']
  %s0 = inlined_call_operand.hbm [shape: f32[16,128], index: 0, kind: input, shape index: {}]
  %s1 = inlined_call_operand.hbm [shape: bf16[128,512], index: 1, kind: input, shape index: {}]
  %s2 = inlined_call_operand.hbm [shape: bf16[256,128], index: 2, kind: input, shape index: {}]
  %s3 = inlined_call_operand.hbm [shape: f32[16,128], index: 3, kind: output, shape index: {}]
  %s4 = sld [smem:[#allocation0]]
  $region38: #{_ffn_2d.1} parent=0
    _
  %s6 = ssub.s32 1, %s4
  %s7 = scalar_select 0, %s6, %s4
  $region1: #{_ffn_2d.1} parent=0
    #allocation2 [shape = 'u8[8192]{0}', space=vmem, size = 0x2000, scoped, tag = 'input window, operand 0, single buffered']
    #allocation3 [shape = 's32[1]{0}', space=sflag, size = 0x4, scoped, tag = 'scoped memory for _ffn_2d.1']
    #allocation4 [shape = 's32[1]{0}', space=sflag, size = 0x4, scoped, tag = 'scoped memory for _ffn_2d.1']
    #allocation5 [shape = 'u8[131072]{0}', space=vmem, size = 0x20000, scoped, tag = 'input window, operand 1, single buffered']
    #allocation6 [shape = 's32[1]{0}', space=sflag, size = 0x4, scoped, tag = 'scoped memory for _ffn_2d.1']
    #allocation7 [shape = 'u8[65536]{0}', space=vmem, size = 0x10000, scoped, tag = 'input window, operand 2, single buffered']
    #allocation8 [shape = 'u8[8192]{0}', space=vmem, size = 0x2000, scoped, tag = 'output window, operand 0, single buffered']
    %8 = vsyncpa [#allocation3], 0
    %9 = vsyncpa [#allocation6], 0
    %10 = vsyncpa [#allocation4], 0
    // Predicated region
    $region2: #{_ffn_2d.1} parent=1 // pred_check
      _
    $region3: #{_ffn_2d.1} parent=1 // pred_check_branch
      %12 = sbr.rel (0) target = $region5
    $region4: #{_ffn_2d.1} parent=1 // pred_region
      %14 = vsyncadd [#allocation3], 0
      %s15 = sshll.u32 %s0, 4
      %s16 = int_to_ptr.hbm [resolvable:$true] %s15
      %s17 = sshll.u32 [#allocation2], 4
      %s18 = int_to_ptr.vmem [resolvable:$true] %s17
      %23 = dma.hbm_to_vmem [thread:$0]  %s16, 256, %s18, [#allocation3], 128, 128, 8
    $region5: #{_ffn_2d.1} parent=1 // pred_fallthru
      _
    // Predicated region
    $region6: #{_ffn_2d.1} parent=1 // pred_check
      _
    $region7: #{_ffn_2d.1} parent=1 // pred_check_branch
      %25 = sbr.rel (0) target = $region9
    $region8: #{_ffn_2d.1} parent=1 // pred_region
      %27 = vsyncadd [#allocation6], 0
      %s28 = sshll.u32 %s1, 4
      %s29 = int_to_ptr.hbm [resolvable:$true] %s28
      %s30 = sshll.u32 [#allocation5], 4
      %s31 = int_to_ptr.vmem [resolvable:$true] %s30
      %36 = dma.hbm_to_vmem [thread:$0]  %s29, 4096, %s31, [#allocation6], 256, 256, 16
    $region9: #{_ffn_2d.1} parent=1 // pred_fallthru
      _
    // Predicated region
    $region10: #{_ffn_2d.1} parent=1 // pred_check
      _
    $region11: #{_ffn_2d.1} parent=1 // pred_check_branch
      %38 = sbr.rel (0) target = $region13
    $region12: #{_ffn_2d.1} parent=1 // pred_region
      %40 = vsyncadd [#allocation6], 0
      %s41 = sshll.u32 %s2, 4
      %s42 = int_to_ptr.hbm [resolvable:$true] %s41
      %s43 = sshll.u32 [#allocation7], 4
      %s44 = int_to_ptr.vmem [resolvable:$true] %s43
      %49 = dma.hbm_to_vmem [thread:$0]  %s42, 2048, %s44, [#allocation6], 64, 64, 4
    $region13: #{_ffn_2d.1} parent=1 // pred_fallthru
      _
    // Predicated region
    $region14: #{_ffn_2d.1} parent=1 // pred_check
      _
    $region15: #{_ffn_2d.1} parent=1 // pred_check_branch
      %51 = sbr.rel (0) target = $region17
    $region16: #{_ffn_2d.1} parent=1 // pred_region
      %53 = dma.done [#allocation3], 256
    $region17: #{_ffn_2d.1} parent=1 // pred_fallthru
      _
    // Predicated region
    $region18: #{_ffn_2d.1} parent=1 // pred_check
      _
    $region19: #{_ffn_2d.1} parent=1 // pred_check_branch
      %55 = sbr.rel (0) target = $region21
    $region20: #{_ffn_2d.1} parent=1 // pred_region
      %57 = dma.done [#allocation6], 4096
    $region21: #{_ffn_2d.1} parent=1 // pred_fallthru
      _
    // Predicated region
    $region22: #{_ffn_2d.1} parent=1 // pred_check
      _
    $region23: #{_ffn_2d.1} parent=1 // pred_check_branch
      %59 = sbr.rel (0) target = $region25
    $region24: #{_ffn_2d.1} parent=1 // pred_region
      %61 = dma.done [#allocation6], 2048
    $region25: #{_ffn_2d.1} parent=1 // pred_fallthru
      _
    %p62 = scmp.eq.s32.totalorder 0, 0
    // Predicated region
    $region26: #{_ffn_2d.1} parent=1 // pred_check
      %p63 = pneg %p62
    $region27: #{_ffn_2d.1} parent=1 // pred_check_branch
      %65 = sbr.rel (%p63) target = $region29
    $region28: #{_ffn_2d.1} parent=1 // pred_region
      %66 = vst [vmem:[#allocation8] sm:$0xff] 0.0
      %67 = vst [vmem:[#allocation8 + $0x8] sm:$0xff] 0.0
    $region29: #{_ffn_2d.1} parent=1 // pred_fallthru
      _
    %v68 = vld [vmem:[#allocation2] sm:$0xff]
    %v69 = vld [vmem:[#allocation2 + $0x8] sm:$0xff]
    %v70 = vld [vmem:[#allocation5] sm:$0xff]
    %v71 = vld [vmem:[#allocation5 + $0x8] sm:$0xff]
    %v72 = vld [vmem:[#allocation5 + $0x10] sm:$0xff]
    %v73 = vld [vmem:[#allocation5 + $0x18] sm:$0xff]
    %v74 = vld [vmem:[#allocation5 + $0x20] sm:$0xff]
    %v75 = vld [vmem:[#allocation5 + $0x28] sm:$0xff]
    %v76 = vld [vmem:[#allocation5 + $0x30] sm:$0xff]
    %v77 = vld [vmem:[#allocation5 + $0x38] sm:$0xff]
    %v78 = vld [vmem:[#allocation5 + $0x40] sm:$0xff]
    %v79 = vld [vmem:[#allocation5 + $0x48] sm:$0xff]
    %v80 = vld [vmem:[#allocation5 + $0x50] sm:$0xff]
    %v81 = vld [vmem:[#allocation5 + $0x58] sm:$0xff]
    %v82 = vld [vmem:[#allocation5 + $0x60] sm:$0xff]
    %v83 = vld [vmem:[#allocation5 + $0x68] sm:$0xff]
    %v84 = vld [vmem:[#allocation5 + $0x70] sm:$0xff]
    %v85 = vld [vmem:[#allocation5 + $0x78] sm:$0xff]
    %v86 = vld [vmem:[#allocation5 + $0x80] sm:$0xff]
    %v87 = vld [vmem:[#allocation5 + $0x88] sm:$0xff]
    %v88 = vld [vmem:[#allocation5 + $0x90] sm:$0xff]
    %v89 = vld [vmem:[#allocation5 + $0x98] sm:$0xff]
    %v90 = vld [vmem:[#allocation5 + $0xa0] sm:$0xff]
    %v91 = vld [vmem:[#allocation5 + $0xa8] sm:$0xff]
    %v92 = vld [vmem:[#allocation5 + $0xb0] sm:$0xff]
    %v93 = vld [vmem:[#allocation5 + $0xb8] sm:$0xff]
    %v94 = vld [vmem:[#allocation5 + $0xc0] sm:$0xff]
    %v95 = vld [vmem:[#allocation5 + $0xc8] sm:$0xff]
    %v96 = vld [vmem:[#allocation5 + $0xd0] sm:$0xff]
    %v97 = vld [vmem:[#allocation5 + $0xd8] sm:$0xff]
    %v98 = vld [vmem:[#allocation5 + $0xe0] sm:$0xff]
    %v99 = vld [vmem:[#allocation5 + $0xe8] sm:$0xff]
    %v100 = vld [vmem:[#allocation5 + $0xf0] sm:$0xff]
    %v101 = vld [vmem:[#allocation5 + $0xf8] sm:$0xff]
    %v134 = vunpack.c.l.b16 %v70
    %v135 = vunpack.c.h.b16 %v70
    %v136 = vunpack.c.l.b16 %v71
    %v137 = vunpack.c.h.b16 %v71
    %v138 = vunpack.c.l.b16 %v72
    %v139 = vunpack.c.h.b16 %v72
    %v140 = vunpack.c.l.b16 %v73
    %v141 = vunpack.c.h.b16 %v73
    %v142 = vunpack.c.l.b16 %v74
    %v143 = vunpack.c.h.b16 %v74
    %v144 = vunpack.c.l.b16 %v75
    %v145 = vunpack.c.h.b16 %v75
    %v146 = vunpack.c.l.b16 %v76
    %v147 = vunpack.c.h.b16 %v76
    %v148 = vunpack.c.l.b16 %v77
    %v149 = vunpack.c.h.b16 %v77
    %v150 = vunpack.c.l.b16 %v78
    %v151 = vunpack.c.h.b16 %v78
    %v152 = vunpack.c.l.b16 %v79
    %v153 = vunpack.c.h.b16 %v79
    %v154 = vunpack.c.l.b16 %v80
    %v155 = vunpack.c.h.b16 %v80
    %v156 = vunpack.c.l.b16 %v81
    %v157 = vunpack.c.h.b16 %v81
    %v158 = vunpack.c.l.b16 %v82
    %v159 = vunpack.c.h.b16 %v82
    %v160 = vunpack.c.l.b16 %v83
    %v161 = vunpack.c.h.b16 %v83
    %v162 = vunpack.c.l.b16 %v84
    %v163 = vunpack.c.h.b16 %v84
    %v164 = vunpack.c.l.b16 %v85
    %v165 = vunpack.c.h.b16 %v85
    %v166 = vunpack.c.l.b16 %v86
    %v167 = vunpack.c.h.b16 %v86
    %v168 = vunpack.c.l.b16 %v87
    %v169 = vunpack.c.h.b16 %v87
    %v170 = vunpack.c.l.b16 %v88
    %v171 = vunpack.c.h.b16 %v88
    %v172 = vunpack.c.l.b16 %v89
    %v173 = vunpack.c.h.b16 %v89
    %v174 = vunpack.c.l.b16 %v90
    %v175 = vunpack.c.h.b16 %v90
    %v176 = vunpack.c.l.b16 %v91
    %v177 = vunpack.c.h.b16 %v91
    %v178 = vunpack.c.l.b16 %v92
    %v179 = vunpack.c.h.b16 %v92
    %v180 = vunpack.c.l.b16 %v93
    %v181 = vunpack.c.h.b16 %v93
    %v182 = vunpack.c.l.b16 %v94
    %v183 = vunpack.c.h.b16 %v94
    %v184 = vunpack.c.l.b16 %v95
    %v185 = vunpack.c.h.b16 %v95
    %v186 = vunpack.c.l.b16 %v96
    %v187 = vunpack.c.h.b16 %v96
    %v188 = vunpack.c.l.b16 %v97
    %v189 = vunpack.c.h.b16 %v97
    %v190 = vunpack.c.l.b16 %v98
    %v191 = vunpack.c.h.b16 %v98
    %v192 = vunpack.c.l.b16 %v99
    %v193 = vunpack.c.h.b16 %v99
    %v194 = vunpack.c.l.b16 %v100
    %v195 = vunpack.c.h.b16 %v100
    %v196 = vunpack.c.l.b16 %v101
    %v197 = vunpack.c.h.b16 %v101
    %v198 = vpack.c.b16 %v138, %v134
    %v199 = vpack.c.b16 %v139, %v135
    %v200 = vpack.c.b16 %v140, %v136
    %v201 = vpack.c.b16 %v141, %v137
    %v202 = vpack.c.b16 %v146, %v142
    %v203 = vpack.c.b16 %v147, %v143
    %v204 = vpack.c.b16 %v148, %v144
    %v205 = vpack.c.b16 %v149, %v145
    %v206 = vpack.c.b16 %v154, %v150
    %v207 = vpack.c.b16 %v155, %v151
    %v208 = vpack.c.b16 %v156, %v152
    %v209 = vpack.c.b16 %v157, %v153
    %v210 = vpack.c.b16 %v162, %v158
    %v211 = vpack.c.b16 %v163, %v159
    %v212 = vpack.c.b16 %v164, %v160
    %v213 = vpack.c.b16 %v165, %v161
    %v214 = vpack.c.b16 %v170, %v166
    %v215 = vpack.c.b16 %v171, %v167
    %v216 = vpack.c.b16 %v172, %v168
    %v217 = vpack.c.b16 %v173, %v169
    %v218 = vpack.c.b16 %v178, %v174
    %v219 = vpack.c.b16 %v179, %v175
    %v220 = vpack.c.b16 %v180, %v176
    %v221 = vpack.c.b16 %v181, %v177
    %v222 = vpack.c.b16 %v186, %v182
    %v223 = vpack.c.b16 %v187, %v183
    %v224 = vpack.c.b16 %v188, %v184
    %v225 = vpack.c.b16 %v189, %v185
    %v226 = vpack.c.b16 %v194, %v190
    %v227 = vpack.c.b16 %v195, %v191
    %v228 = vpack.c.b16 %v196, %v192
    %v229 = vpack.c.b16 %v197, %v193
    %262 = vmatpush.bf16.msra.mxu0 %v226
    %263 = vmatpush.bf16.msra.mxu0 %v222
    %264 = vmatpush.bf16.msra.mxu0 %v218
    %265 = vmatpush.bf16.msra.mxu0 %v214
    %266 = vmatpush.bf16.msra.mxu0 %v210
    %267 = vmatpush.bf16.msra.mxu0 %v206
    %268 = vmatpush.bf16.msra.mxu0 %v202
    %269 = vmatpush.bf16.msra.mxu0 %v198
    %270 = vmatmul.f32.gmra.mxu0 %v68
    %v271 = vpop.f32.mrf.mxu0
    %v272 = vadd.f32 0.0, %v271
    %273 = vmatmul.f32.gmra.mxu0 %v69
    %v274 = vpop.f32.mrf.mxu0
    %v275 = vadd.f32 0.0, %v274
    %276 = vdwg.mxu0
    %277 = vmatpush.bf16.msra.mxu0 %v227
    %278 = vmatpush.bf16.msra.mxu0 %v223
    %279 = vmatpush.bf16.msra.mxu0 %v219
    %280 = vmatpush.bf16.msra.mxu0 %v215
    %281 = vmatpush.bf16.msra.mxu0 %v211
    %282 = vmatpush.bf16.msra.mxu0 %v207
    %283 = vmatpush.bf16.msra.mxu0 %v203
    %284 = vmatpush.bf16.msra.mxu0 %v199
    %285 = vmatmul.f32.gmra.mxu0 %v68
    %v286 = vpop.f32.mrf.mxu0
    %v287 = vadd.f32 0.0, %v286
    %288 = vmatmul.f32.gmra.mxu0 %v69
    %v289 = vpop.f32.mrf.mxu0
    %v290 = vadd.f32 0.0, %v289
    %291 = vdwg.mxu0
    %292 = vmatpush.bf16.msra.mxu0 %v228
    %293 = vmatpush.bf16.msra.mxu0 %v224
    %294 = vmatpush.bf16.msra.mxu0 %v220
    %295 = vmatpush.bf16.msra.mxu0 %v216
    %296 = vmatpush.bf16.msra.mxu0 %v212
    %297 = vmatpush.bf16.msra.mxu0 %v208
    %298 = vmatpush.bf16.msra.mxu0 %v204
    %299 = vmatpush.bf16.msra.mxu0 %v200
    %300 = vmatmul.f32.gmra.mxu0 %v68
    %v301 = vpop.f32.mrf.mxu0
    %v302 = vadd.f32 0.0, %v301
    %303 = vmatmul.f32.gmra.mxu0 %v69
    %v304 = vpop.f32.mrf.mxu0
    %v305 = vadd.f32 0.0, %v304
    %306 = vdwg.mxu0
    %307 = vmatpush.bf16.msra.mxu0 %v229
    %308 = vmatpush.bf16.msra.mxu0 %v225
    %309 = vmatpush.bf16.msra.mxu0 %v221
    %310 = vmatpush.bf16.msra.mxu0 %v217
    %311 = vmatpush.bf16.msra.mxu0 %v213
    %312 = vmatpush.bf16.msra.mxu0 %v209
    %313 = vmatpush.bf16.msra.mxu0 %v205
    %314 = vmatpush.bf16.msra.mxu0 %v201
    %315 = vmatmul.f32.gmra.mxu0 %v68
    %v316 = vpop.f32.mrf.mxu0
    %v317 = vadd.f32 0.0, %v316
    %318 = vmatmul.f32.gmra.mxu0 %v69
    %v319 = vpop.f32.mrf.mxu0
    %v320 = vadd.f32 0.0, %v319
    %321 = vdwg.mxu0
    %v322 = vxor.u32 %v272, 2147483648
    %v323 = vxor.u32 %v287, 2147483648
    %v324 = vxor.u32 %v275, 2147483648
    %v325 = vxor.u32 %v290, 2147483648
    %v326 = vmul.f32 %v322, 1.442695
    %v327 = vpow.pop %v326
    %v328 = vmul.f32 %v323, 1.442695
    %v329 = vpow.pop %v328
    %v330 = vmul.f32 %v324, 1.442695
    %v331 = vpow.pop %v330
    %v332 = vmul.f32 %v325, 1.442695
    %v333 = vpow.pop %v332
    %v334 = vadd.f32 %v327, 1.0
    %v335 = vadd.f32 %v329, 1.0
    %v336 = vadd.f32 %v331, 1.0
    %v337 = vadd.f32 %v333, 1.0
    %v338 = vrcp.pop %v334
    %v339 = vmul.f32 %v334, %v338
    %v340 = vsub.f32 1.0, %v339
    %v341 = vmul.f32 %v338, %v340
    %v342 = vadd.f32 %v338, %v341
    %vm343 = vweird.f32 %v334
    %vm344 = vweird.f32 %v338
    %vm345 = vmor %vm343, %vm344
    %v346 = vsel %vm345, %v338, %v342
    %v347 = vand.u32 2147483647, %v334
    %vm348 = vcmp.eq.f32.partialorder %v347, 8.507059e+37
    %v349 = vand.u32 %v334, 2147483648
    %v350 = vor.u32 1.1754944e-38, %v349
    %v351 = vsel %vm348, %v350, %v346
    %v352 = vmul.f32 1.0, %v351
    %v353 = vrcp.pop %v335
    %v354 = vmul.f32 %v335, %v353
    %v355 = vsub.f32 1.0, %v354
    %v356 = vmul.f32 %v353, %v355
    %v357 = vadd.f32 %v353, %v356
    %vm358 = vweird.f32 %v335
    %vm359 = vweird.f32 %v353
    %vm360 = vmor %vm358, %vm359
    %v361 = vsel %vm360, %v353, %v357
    %v362 = vand.u32 2147483647, %v335
    %vm363 = vcmp.eq.f32.partialorder %v362, 8.507059e+37
    %v364 = vand.u32 %v335, 2147483648
    %v365 = vor.u32 1.1754944e-38, %v364
    %v366 = vsel %vm363, %v365, %v361
    %v367 = vmul.f32 1.0, %v366
    %v368 = vrcp.pop %v336
    %v369 = vmul.f32 %v336, %v368
    %v370 = vsub.f32 1.0, %v369
    %v371 = vmul.f32 %v368, %v370
    %v372 = vadd.f32 %v368, %v371
    %vm373 = vweird.f32 %v336
    %vm374 = vweird.f32 %v368
    %vm375 = vmor %vm373, %vm374
    %v376 = vsel %vm375, %v368, %v372
    %v377 = vand.u32 2147483647, %v336
    %vm378 = vcmp.eq.f32.partialorder %v377, 8.507059e+37
    %v379 = vand.u32 %v336, 2147483648
    %v380 = vor.u32 1.1754944e-38, %v379
    %v381 = vsel %vm378, %v380, %v376
    %v382 = vmul.f32 1.0, %v381
    %v383 = vrcp.pop %v337
    %v384 = vmul.f32 %v337, %v383
    %v385 = vsub.f32 1.0, %v384
    %v386 = vmul.f32 %v383, %v385
    %v387 = vadd.f32 %v383, %v386
    %vm388 = vweird.f32 %v337
    %vm389 = vweird.f32 %v383
    %vm390 = vmor %vm388, %vm389
    %v391 = vsel %vm390, %v383, %v387
    %v392 = vand.u32 2147483647, %v337
    %vm393 = vcmp.eq.f32.partialorder %v392, 8.507059e+37
    %v394 = vand.u32 %v337, 2147483648
    %v395 = vor.u32 1.1754944e-38, %v394
    %v396 = vsel %vm393, %v395, %v391
    %v397 = vmul.f32 1.0, %v396
    %v398 = vmul.f32 %v272, %v352
    %v399 = vmul.f32 %v287, %v367
    %v400 = vmul.f32 %v275, %v382
    %v401 = vmul.f32 %v290, %v397
    %v402 = vmul.f32 %v398, %v302
    %v403 = vmul.f32 %v399, %v317
    %v404 = vmul.f32 %v400, %v305
    %v405 = vmul.f32 %v401, %v320
    %v406 = vld [vmem:[#allocation8] sm:$0xff]
    %v407 = vld [vmem:[#allocation8 + $0x8] sm:$0xff]
    %v408 = vpack.c.bf16 %v404, %v402
    %v409 = vpack.c.bf16 %v405, %v403
    %v410 = vld [vmem:[#allocation7] sm:$0xf]
    %v411 = vld [vmem:[#allocation7 + $0x4] sm:$0xf]
    %v412 = vld [vmem:[#allocation7 + $0x8] sm:$0xf]
    %v413 = vld [vmem:[#allocation7 + $0xc] sm:$0xf]
    %v414 = vld [vmem:[#allocation7 + $0x10] sm:$0xf]
    %v415 = vld [vmem:[#allocation7 + $0x14] sm:$0xf]
    %v416 = vld [vmem:[#allocation7 + $0x18] sm:$0xf]
    %v417 = vld [vmem:[#allocation7 + $0x1c] sm:$0xf]
    %v418 = vld [vmem:[#allocation7 + $0x20] sm:$0xf]
    %v419 = vld [vmem:[#allocation7 + $0x24] sm:$0xf]
    %v420 = vld [vmem:[#allocation7 + $0x28] sm:$0xf]
    %v421 = vld [vmem:[#allocation7 + $0x2c] sm:$0xf]
    %v422 = vld [vmem:[#allocation7 + $0x30] sm:$0xf]
    %v423 = vld [vmem:[#allocation7 + $0x34] sm:$0xf]
    %v424 = vld [vmem:[#allocation7 + $0x38] sm:$0xf]
    %v425 = vld [vmem:[#allocation7 + $0x3c] sm:$0xf]
    %v426 = vld [vmem:[#allocation7 + $0x40] sm:$0xf]
    %v427 = vld [vmem:[#allocation7 + $0x44] sm:$0xf]
    %v428 = vld [vmem:[#allocation7 + $0x48] sm:$0xf]
    %v429 = vld [vmem:[#allocation7 + $0x4c] sm:$0xf]
    %v430 = vld [vmem:[#allocation7 + $0x50] sm:$0xf]
    %v431 = vld [vmem:[#allocation7 + $0x54] sm:$0xf]
    %v432 = vld [vmem:[#allocation7 + $0x58] sm:$0xf]
    %v433 = vld [vmem:[#allocation7 + $0x5c] sm:$0xf]
    %v434 = vld [vmem:[#allocation7 + $0x60] sm:$0xf]
    %v435 = vld [vmem:[#allocation7 + $0x64] sm:$0xf]
    %v436 = vld [vmem:[#allocation7 + $0x68] sm:$0xf]
    %v437 = vld [vmem:[#allocation7 + $0x6c] sm:$0xf]
    %v438 = vld [vmem:[#allocation7 + $0x70] sm:$0xf]
    %v439 = vld [vmem:[#allocation7 + $0x74] sm:$0xf]
    %v440 = vld [vmem:[#allocation7 + $0x78] sm:$0xf]
    %v441 = vld [vmem:[#allocation7 + $0x7c] sm:$0xf]
    %v474 = vunpack.c.l.b16 %v410
    %v475 = vunpack.c.l.b16 %v411
    %v476 = vunpack.c.l.b16 %v412
    %v477 = vunpack.c.l.b16 %v413
    %v478 = vunpack.c.l.b16 %v414
    %v479 = vunpack.c.l.b16 %v415
    %v480 = vunpack.c.l.b16 %v416
    %v481 = vunpack.c.l.b16 %v417
    %v482 = vunpack.c.l.b16 %v418
    %v483 = vunpack.c.l.b16 %v419
    %v484 = vunpack.c.l.b16 %v420
    %v485 = vunpack.c.l.b16 %v421
    %v486 = vunpack.c.l.b16 %v422
    %v487 = vunpack.c.l.b16 %v423
    %v488 = vunpack.c.l.b16 %v424
    %v489 = vunpack.c.l.b16 %v425
    %v490 = vunpack.c.l.b16 %v426
    %v491 = vunpack.c.l.b16 %v427
    %v492 = vunpack.c.l.b16 %v428
    %v493 = vunpack.c.l.b16 %v429
    %v494 = vunpack.c.l.b16 %v430
    %v495 = vunpack.c.l.b16 %v431
    %v496 = vunpack.c.l.b16 %v432
    %v497 = vunpack.c.l.b16 %v433
    %v498 = vunpack.c.l.b16 %v434
    %v499 = vunpack.c.l.b16 %v435
    %v500 = vunpack.c.l.b16 %v436
    %v501 = vunpack.c.l.b16 %v437
    %v502 = vunpack.c.l.b16 %v438
    %v503 = vunpack.c.l.b16 %v439
    %v504 = vunpack.c.l.b16 %v440
    %v505 = vunpack.c.l.b16 %v441
    %v506 = vpack.c.b16 %v475, %v474
    %v507 = vpack.c.b16 %v477, %v476
    %v508 = vpack.c.b16 %v479, %v478
    %v509 = vpack.c.b16 %v481, %v480
    %v510 = vpack.c.b16 %v483, %v482
    %v511 = vpack.c.b16 %v485, %v484
    %v512 = vpack.c.b16 %v487, %v486
    %v513 = vpack.c.b16 %v489, %v488
    %v514 = vpack.c.b16 %v491, %v490
    %v515 = vpack.c.b16 %v493, %v492
    %v516 = vpack.c.b16 %v495, %v494
    %v517 = vpack.c.b16 %v497, %v496
    %v518 = vpack.c.b16 %v499, %v498
    %v519 = vpack.c.b16 %v501, %v500
    %v520 = vpack.c.b16 %v503, %v502
    %v521 = vpack.c.b16 %v505, %v504
    %538 = vmatpush.bf16.msra.mxu0 %v513
    %539 = vmatpush.bf16.msra.mxu0 %v512
    %540 = vmatpush.bf16.msra.mxu0 %v511
    %541 = vmatpush.bf16.msra.mxu0 %v510
    %542 = vmatpush.bf16.msra.mxu0 %v509
    %543 = vmatpush.bf16.msra.mxu0 %v508
    %544 = vmatpush.bf16.msra.mxu0 %v507
    %545 = vmatpush.bf16.msra.mxu0 %v506
    %546 = vmatmul.bf16.gmra.mxu0 %v408
    %v547 = vpop.f32.mrf.mxu0
    %v548 = vadd.f32 0.0, %v547
    %v549 = vpop.f32.mrf.mxu0
    %v550 = vadd.f32 0.0, %v549
    %551 = vdwg.mxu0
    %552 = vmatpush.bf16.msra.mxu0 %v521
    %553 = vmatpush.bf16.msra.mxu0 %v520
    %554 = vmatpush.bf16.msra.mxu0 %v519
    %555 = vmatpush.bf16.msra.mxu0 %v518
    %556 = vmatpush.bf16.msra.mxu0 %v517
    %557 = vmatpush.bf16.msra.mxu0 %v516
    %558 = vmatpush.bf16.msra.mxu0 %v515
    %559 = vmatpush.bf16.msra.mxu0 %v514
    %560 = vmatmul.bf16.gmra.mxu0 %v409
    %v561 = vpop.f32.mrf.mxu0
    %v562 = vadd.f32 %v548, %v561
    %v563 = vpop.f32.mrf.mxu0
    %v564 = vadd.f32 %v550, %v563
    %565 = vdwg.mxu0
    %v566 = vadd.f32 %v406, %v562
    %v567 = vadd.f32 %v407, %v564
    %568 = vst [vmem:[#allocation8] sm:$0xff] %v566
    %569 = vst [vmem:[#allocation8 + $0x8] sm:$0xff] %v567
    // Predicated region
    $region30: #{_ffn_2d.1} parent=1 // pred_check
      _
    $region31: #{_ffn_2d.1} parent=1 // pred_check_branch
      %571 = sbr.rel (0) target = $region33
    $region32: #{_ffn_2d.1} parent=1 // pred_region
      %573 = vsyncadd [#allocation4], 0
      %s574 = sshll.u32 [#allocation8], 4
      %s575 = int_to_ptr.vmem [resolvable:$true] %s574
      %s576 = sshll.u32 %s3, 4
      %s577 = int_to_ptr.hbm [resolvable:$true] %s576
      %582 = dma.vmem_to_hbm [thread:$0]  %s575, 256, %s577, [#allocation4], 128, 128, 8
    $region33: #{_ffn_2d.1} parent=1 // pred_fallthru
      _
    // Predicated region
    $region34: #{_ffn_2d.1} parent=1 // pred_check
      _
    $region35: #{_ffn_2d.1} parent=1 // pred_check_branch
      %584 = sbr.rel (0) target = $region37
    $region36: #{_ffn_2d.1} parent=1 // pred_region
      %586 = dma.done [#allocation4], 256
    $region37: #{_ffn_2d.1} parent=1 // pred_fallthru
      _
    %587 = vsyncpa [#allocation3], 1
    %588 = vsyncpa [#allocation6], 1
    %589 = vsyncpa [#allocation4], 1

</llo_original>
